<compile_context>
chip_gen: v7x
topology: tpu7x:2x2x1
jax: 0.10.0
libtpu: 0.0.40
codegen_flags: <defaults>
</compile_context>

<pallas_src>
import jax
import jax.numpy as jnp
from jax import lax
from jax.experimental import pallas as pl
from jax.experimental.pallas import tpu as pltpu

_MAX_TILE_B = 4096  # multiple of 128; per-tile working set ~1.5 MiB


def actor_kernel(x_ref, w1_ref, b1_ref, w2_ref, b2_ref, w3_ref, b3_ref, out_ref):
    """Whole MLP + softmax for one batch tile, feature-major (batch on lanes).

    x_ref is (tile_b, state_dim) f32 exactly as stored in HBM (no wrapper
    transpose / cast); the dots are expressed so every result is
    (features, tile_b).  Matmul operands may be bf16 (weights pre-cast once,
    activations cast in-kernel); accumulation and softmax are f32.
    """
    x = x_ref[...]

    # Layer 1: h = (x @ w1)^T -> (64, tile_b).  Contract w1 dim 0 with x dim 1.
    h = lax.dot_general(
        w1_ref[...], x.astype(w1_ref.dtype),
        dimension_numbers=(((0,), (1,)), ((), ())),
        preferred_element_type=jnp.float32)
    h = jnp.tanh(h + b1_ref[...])                      # b1: (64, 1), lane bcast

    # Layer 2: (32, tile_b).
    h = lax.dot_general(
        w2_ref[...], h.astype(w2_ref.dtype),
        dimension_numbers=(((0,), (0,)), ((), ())),
        preferred_element_type=jnp.float32)
    h = jnp.tanh(h + b2_ref[...])

    # Layer 3: logits (n_actions, tile_b).
    logits = lax.dot_general(
        w3_ref[...], h.astype(w3_ref.dtype),
        dimension_numbers=(((0,), (0,)), ((), ())),
        preferred_element_type=jnp.float32)
    logits = logits + b3_ref[...]

    # Softmax over actions = sublane axis.  Exact normalization (rows sum to 1
    # up to f32 rounding), per correctness review.
    m = jnp.max(logits, axis=0, keepdims=True)
    e = jnp.exp(logits - m)
    denom = jnp.sum(e, axis=0, keepdims=True)
    out_ref[...] = (e / denom).astype(out_ref.dtype)   # lane-dense store


def actor_forward(x, params, *, tile_b=None, out_dtype=jnp.float32):
    """x: (B, state_dim) float32. params: w1,b1,w2,b2,w3,b3 (weights (in,out),
    biases (out,1)).  Returns (B, n_actions) action probabilities."""
    B, state_dim = x.shape
    h1 = params["w1"].shape[1]
    h2 = params["w2"].shape[1]
    n_actions = params["w3"].shape[1]

    # --- batch tile: whole batch in one tile whenever it fits --------------
    if tile_b is None:
        tile_b = B if B <= _MAX_TILE_B else _MAX_TILE_B
    tile_b = int(tile_b)
    if tile_b >= B:
        tile_b = B                                   # single tile, any B
    else:
        # Tiled path: out block's lane dim must be a multiple of 128 and the
        # x block's sublane dim a multiple of 8.
        tile_b = max(128, (tile_b // 128) * 128)

    grid = (pl.cdiv(B, tile_b),)                     # last block may overhang

    in_specs = [
        pl.BlockSpec((tile_b, state_dim), lambda i: (i, 0)),   # x (batch-major)
        pl.BlockSpec((state_dim, h1), lambda i: (0, 0)),       # w1
        pl.BlockSpec((h1, 1), lambda i: (0, 0)),               # b1
        pl.BlockSpec((h1, h2), lambda i: (0, 0)),              # w2
        pl.BlockSpec((h2, 1), lambda i: (0, 0)),               # b2
        pl.BlockSpec((h2, n_actions), lambda i: (0, 0)),       # w3
        pl.BlockSpec((n_actions, 1), lambda i: (0, 0)),        # b3
    ]
    out_spec = pl.BlockSpec((n_actions, tile_b), lambda i: (0, i))

    out_t = pl.pallas_call(
        actor_kernel,
        out_shape=jax.ShapeDtypeStruct((n_actions, B), out_dtype),
        grid_spec=pl.GridSpec(grid=grid, in_specs=in_specs, out_specs=out_spec),
        compiler_params=pltpu.CompilerParams(
            dimension_semantics=("parallel",),
            vmem_limit_bytes=32 * 1024 * 1024,       # safe on v5e/v6e/v7x
        ),
    )(x, params["w1"], params["b1"], params["w2"], params["b2"],
      params["w3"], params["b3"])

    # Layout plumbing back to the PyTorch (B, n_actions) convention.
    return out_t.T


def cast_matmul_weights(params, dtype):
    """Cast the matmul weights once, outside the per-call path; biases stay f32."""
    out = dict(params)
    for k in ("w1", "w2", "w3"):
        out[k] = params[k].astype(dtype)
    return out


def init_actor_params(key, state_dim, n_actions):
    """Mimics nn.Linear's U(-1/sqrt(in), 1/sqrt(in)) init.

    Weights stored (in, out) (transpose of nn.Linear storage); biases (out, 1).
    """
    dims = [(state_dim, 64), (64, 32), (32, n_actions)]
    params = {}
    for idx, (din, dout) in enumerate(dims, start=1):
        key, kw, kb = jax.random.split(key, 3)
        bound = float(din) ** -0.5
        params[f"w{idx}"] = jax.random.uniform(
            kw, (din, dout), jnp.float32, minval=-bound, maxval=bound)
        params[f"b{idx}"] = jax.random.uniform(
            kb, (dout, 1), jnp.float32, minval=-bound, maxval=bound)
    return params


def actor_reference(x, params):
    h = jnp.tanh(x @ params["w1"].astype(jnp.float32) + params["b1"][:, 0])
    h = jnp.tanh(h @ params["w2"].astype(jnp.float32) + params["b2"][:, 0])
    logits = h @ params["w3"].astype(jnp.float32) + params["b3"][:, 0]
    return jax.nn.softmax(logits, axis=-1)


if __name__ == "__main__":
    key = jax.random.PRNGKey(0)
    k_params, k_x1, k_x2, k_x3 = jax.random.split(key, 4)

    state_dim = 16
    n_actions = 8
    params = init_actor_params(k_params, state_dim, n_actions)

    # --- small single-tile f32 run ----------------------------------------
    x = jax.random.normal(k_x1, (8, state_dim), dtype=jnp.float32)
    out = jax.block_until_ready(actor_forward(x, params))
    ref = actor_reference(x, params)
    assert out.shape == (8, n_actions)
    assert jnp.allclose(out, ref, atol=2e-3, rtol=2e-3), "f32 mismatch vs reference"
    assert jnp.allclose(jnp.sum(out, axis=-1), 1.0, atol=1e-3), "rows must sum to 1"

    # --- ragged batch, still one tile (whole batch fits in VMEM) -----------
    x2 = jax.random.normal(k_x2, (24, state_dim), dtype=jnp.float32)
    out2 = jax.block_until_ready(actor_forward(x2, params))
    ref2 = actor_reference(x2, params)
    assert out2.shape == (24, n_actions)
    assert jnp.allclose(out2, ref2, atol=2e-3, rtol=2e-3), "ragged-batch mismatch"
    assert jnp.allclose(jnp.sum(out2, axis=-1), 1.0, atol=1e-3)

    # --- multi-tile grid with an overhanging last block (no pad/slice) -----
    x3 = jax.random.normal(k_x3, (200, state_dim), dtype=jnp.float32)
    out3 = jax.block_until_ready(actor_forward(x3, params, tile_b=128))  # 2 tiles
    ref3 = actor_reference(x3, params)
    assert out3.shape == (200, n_actions)
    assert jnp.allclose(out3, ref3, atol=2e-3, rtol=2e-3), "multi-tile mismatch"
    assert jnp.allclose(jnp.sum(out3, axis=-1), 1.0, atol=1e-3)

    # --- bf16 matmul weights (cast once, outside the call path) ------------
    params_bf16 = cast_matmul_weights(params, jnp.bfloat16)
    out4 = jax.block_until_ready(actor_forward(x3, params_bf16))
    assert out4.shape == (200, n_actions)
    assert jnp.allclose(out4, ref3, atol=5e-2, rtol=5e-2), "bf16-weight mismatch"
    assert jnp.allclose(jnp.sum(out4, axis=-1), 1.0, atol=1e-3)

    # --- optional bf16 output writeback -------------------------------------
    out5 = jax.block_until_ready(actor_forward(x, params, out_dtype=jnp.bfloat16))
    assert out5.dtype == jnp.bfloat16
    assert jnp.allclose(out5.astype(jnp.float32), ref, atol=1e-2, rtol=1e-2)

    print("KERNEL_OK")
</pallas_src>

<mosaic_0001>
module attributes {stable_mosaic.version = 11 : i64} {
  func.func @actor_kernel(%arg0: i32, %arg1: memref<8x16xf32, #tpu.memory_space<vmem>>, %arg2: memref<16x64xf32, #tpu.memory_space<vmem>>, %arg3: memref<64x1xf32, #tpu.memory_space<vmem>>, %arg4: memref<64x32xf32, #tpu.memory_space<vmem>>, %arg5: memref<32x1xf32, #tpu.memory_space<vmem>>, %arg6: memref<32x8xf32, #tpu.memory_space<vmem>>, %arg7: memref<8x1xf32, #tpu.memory_space<vmem>>, %arg8: memref<8x8xf32, #tpu.memory_space<vmem>>) attributes {dimension_semantics = [#tpu.dimension_semantics<parallel>], iteration_bounds = array<i64: 1>, scalar_prefetch = 0 : i64, scratch_operands = 0 : i64, tpu.core_type = #tpu.core_type<tc>, window_params = [{transform_indices = @transform_0, window_bounds = array<i64: 8, 16>}, {pipeline_mode = #tpu.pipeline_mode<synchronous>, transform_indices = @transform_1, window_bounds = array<i64: 16, 64>}, {pipeline_mode = #tpu.pipeline_mode<synchronous>, transform_indices = @transform_2, window_bounds = array<i64: 64, 1>}, {pipeline_mode = #tpu.pipeline_mode<synchronous>, transform_indices = @transform_3, window_bounds = array<i64: 64, 32>}, {pipeline_mode = #tpu.pipeline_mode<synchronous>, transform_indices = @transform_4, window_bounds = array<i64: 32, 1>}, {pipeline_mode = #tpu.pipeline_mode<synchronous>, transform_indices = @transform_5, window_bounds = array<i64: 32, 8>}, {pipeline_mode = #tpu.pipeline_mode<synchronous>, transform_indices = @transform_6, window_bounds = array<i64: 8, 1>}, {transform_indices = @transform_7, window_bounds = array<i64: 8, 8>}]} {
    %c0 = arith.constant 0 : index
    %c0_0 = arith.constant 0 : index
    %0 = vector.load %arg1[%c0, %c0_0] : memref<8x16xf32, #tpu.memory_space<vmem>>, vector<8x16xf32>
    %c0_1 = arith.constant 0 : index
    %c0_2 = arith.constant 0 : index
    %1 = vector.load %arg2[%c0_1, %c0_2] : memref<16x64xf32, #tpu.memory_space<vmem>>, vector<16x64xf32>
    %cst = arith.constant dense<0.000000e+00> : vector<64x8xf32>
    %2 = tpu.matmul %1, %0, %cst {dimension_numbers = #tpu.dot_dimension_numbers<[0], [1], [1], [0], [0, 1, 1, 0], [], []>} : vector<16x64xf32>, vector<8x16xf32>, vector<64x8xf32> -> vector<64x8xf32>
    %c0_3 = arith.constant 0 : index
    %c0_4 = arith.constant 0 : index
    %3 = vector.load %arg3[%c0_3, %c0_4] : memref<64x1xf32, #tpu.memory_space<vmem>>, vector<64x1xf32>
    %4 = vector.broadcast %3 : vector<64x1xf32> to vector<64x8xf32>
    %5 = arith.addf %2, %4 : vector<64x8xf32>
    %6 = math.tanh %5 : vector<64x8xf32>
    %c0_5 = arith.constant 0 : index
    %c0_6 = arith.constant 0 : index
    %7 = vector.load %arg4[%c0_5, %c0_6] : memref<64x32xf32, #tpu.memory_space<vmem>>, vector<64x32xf32>
    %cst_7 = arith.constant dense<0.000000e+00> : vector<32x8xf32>
    %8 = tpu.matmul %7, %6, %cst_7 {dimension_numbers = #tpu.dot_dimension_numbers<[0], [0], [1], [1], [0, 1, 1, 1], [], []>} : vector<64x32xf32>, vector<64x8xf32>, vector<32x8xf32> -> vector<32x8xf32>
    %c0_8 = arith.constant 0 : index
    %c0_9 = arith.constant 0 : index
    %9 = vector.load %arg5[%c0_8, %c0_9] : memref<32x1xf32, #tpu.memory_space<vmem>>, vector<32x1xf32>
    %10 = vector.broadcast %9 : vector<32x1xf32> to vector<32x8xf32>
    %11 = arith.addf %8, %10 : vector<32x8xf32>
    %12 = math.tanh %11 : vector<32x8xf32>
    %c0_10 = arith.constant 0 : index
    %c0_11 = arith.constant 0 : index
    %13 = vector.load %arg6[%c0_10, %c0_11] : memref<32x8xf32, #tpu.memory_space<vmem>>, vector<32x8xf32>
    %cst_12 = arith.constant dense<0.000000e+00> : vector<8x8xf32>
    %14 = tpu.matmul %13, %12, %cst_12 {dimension_numbers = #tpu.dot_dimension_numbers<[0], [0], [1], [1], [0, 1, 1, 1], [], []>} : vector<32x8xf32>, vector<32x8xf32>, vector<8x8xf32> -> vector<8x8xf32>
    %c0_13 = arith.constant 0 : index
    %c0_14 = arith.constant 0 : index
    %15 = vector.load %arg7[%c0_13, %c0_14] : memref<8x1xf32, #tpu.memory_space<vmem>>, vector<8x1xf32>
    %16 = vector.broadcast %15 : vector<8x1xf32> to vector<8x8xf32>
    %17 = arith.addf %14, %16 : vector<8x8xf32>
    %cst_15 = arith.constant dense<0xFF800000> : vector<8xf32>
    %18 = vector.multi_reduction <maximumf>, %17, %cst_15 [0] : vector<8x8xf32> to vector<8xf32>
    %19 = vector.shape_cast %18 : vector<8xf32> to vector<1x8xf32>
    %20 = vector.broadcast %19 : vector<1x8xf32> to vector<8x8xf32>
    %21 = arith.subf %17, %20 : vector<8x8xf32>
    %22 = math.exp %21 : vector<8x8xf32>
    %cst_16 = arith.constant dense<0.000000e+00> : vector<8xf32>
    %23 = vector.multi_reduction <add>, %22, %cst_16 [0] : vector<8x8xf32> to vector<8xf32>
    %24 = vector.shape_cast %23 : vector<8xf32> to vector<1x8xf32>
    %25 = vector.broadcast %24 : vector<1x8xf32> to vector<8x8xf32>
    %26 = arith.divf %22, %25 : vector<8x8xf32>
    %c0_17 = arith.constant 0 : index
    %c0_18 = arith.constant 0 : index
    %27 = vector.load %arg8[%c0_17, %c0_18] : memref<8x8xf32, #tpu.memory_space<vmem>>, vector<8x8xf32>
    tpu.vector_store %arg8[%c0_17, %c0_18], %26 {strides = array<i32>} : memref<8x8xf32, #tpu.memory_space<vmem>>, vector<8x8xf32>,
    return
  }
  func.func @transform_0(%arg0: i32) -> (i32, i32) {
    %c0_i32 = arith.constant 0 : i32
    %c0_i32_0 = arith.constant 0 : i32
    return %arg0, %c0_i32 : i32, i32
  }
  func.func @transform_1(%arg0: i32) -> (i32, i32) {
    %c0_i32 = arith.constant 0 : i32
    %c0_i32_0 = arith.constant 0 : i32
    %c0_i32_1 = arith.constant 0 : i32
    return %c0_i32, %c0_i32_0 : i32, i32
  }
  func.func @transform_2(%arg0: i32) -> (i32, i32) {
    %c0_i32 = arith.constant 0 : i32
    %c0_i32_0 = arith.constant 0 : i32
    %c0_i32_1 = arith.constant 0 : i32
    return %c0_i32, %c0_i32_0 : i32, i32
  }
  func.func @transform_3(%arg0: i32) -> (i32, i32) {
    %c0_i32 = arith.constant 0 : i32
    %c0_i32_0 = arith.constant 0 : i32
    %c0_i32_1 = arith.constant 0 : i32
    return %c0_i32, %c0_i32_0 : i32, i32
  }
  func.func @transform_4(%arg0: i32) -> (i32, i32) {
    %c0_i32 = arith.constant 0 : i32
    %c0_i32_0 = arith.constant 0 : i32
    %c0_i32_1 = arith.constant 0 : i32
    return %c0_i32, %c0_i32_0 : i32, i32
  }
  func.func @transform_5(%arg0: i32) -> (i32, i32) {
    %c0_i32 = arith.constant 0 : i32
    %c0_i32_0 = arith.constant 0 : i32
    %c0_i32_1 = arith.constant 0 : i32
    return %c0_i32, %c0_i32_0 : i32, i32
  }
  func.func @transform_6(%arg0: i32) -> (i32, i32) {
    %c0_i32 = arith.constant 0 : i32
    %c0_i32_0 = arith.constant 0 : i32
    %c0_i32_1 = arith.constant 0 : i32
    return %c0_i32, %c0_i32_0 : i32, i32
  }
  func.func @transform_7(%arg0: i32) -> (i32, i32) {
    %c0_i32 = arith.constant 0 : i32
    %c0_i32_0 = arith.constant 0 : i32
    return %c0_i32, %arg0 : i32, i32
  }
}

</mosaic_0001>

<llo_original>
// kernel: tpu_custom_call.1
$region0: #{tpu_custom_call.1}
  #allocation0 [shape = 'u32[]', space=smem, size = 0x4, offset = 0x4, fixed_abs, tag = 'smem constant byte address 0x4 - core index']
  #allocation1 [shape = 'u32[144,128]{1,0:T(1,128)}', space=vmem, size = 0x12000, scoped, tag = 'internal scratch']
  %s0 = inlined_call_operand.vmem [shape: f32[8,16], index: 0, kind: input, shape index: {}]
  %s1 = inlined_call_operand.vmem [shape: f32[16,64], index: 1, kind: input, shape index: {}]
  %s2 = inlined_call_operand.vmem [shape: f32[64,1], index: 2, kind: input, shape index: {}]
  %s3 = inlined_call_operand.vmem [shape: f32[64,32], index: 3, kind: input, shape index: {}]
  %s4 = inlined_call_operand.vmem [shape: f32[32,1], index: 4, kind: input, shape index: {}]
  %s5 = inlined_call_operand.vmem [shape: f32[32,8], index: 5, kind: input, shape index: {}]
  %s6 = inlined_call_operand.vmem [shape: f32[8,1], index: 6, kind: input, shape index: {}]
  %s7 = inlined_call_operand.hbm [shape: f32[8,8], index: 7, kind: output, shape index: {}]
  %s8 = sld [smem:[#allocation0]]
  $region38: #{tpu_custom_call.1} parent=0
    _
  %s10 = ssub.s32 1, %s8
  %s11 = scalar_select 0, %s10, %s8
  $region1: #{tpu_custom_call.1} parent=0
    #allocation2 [shape = 'u8[4096]{0}', space=vmem, size = 0x1000, scoped, tag = 'output window, operand 0, single buffered']
    #allocation3 [shape = 's32[1]{0}', space=sflag, size = 0x4, scoped, tag = 'scoped memory for tpu_custom_call.1']
    %12 = vsyncpa [#allocation3], 0
    // Predicated region
    $region2: #{tpu_custom_call.1} parent=1 // pred_check
      _
    $region3: #{tpu_custom_call.1} parent=1 // pred_check_branch
      %14 = sbr.rel (0) target = $region5
    $region4: #{tpu_custom_call.1} parent=1 // pred_region
      _
    $region5: #{tpu_custom_call.1} parent=1 // pred_fallthru
      _
    // Predicated region
    $region6: #{tpu_custom_call.1} parent=1 // pred_check
      _
    $region7: #{tpu_custom_call.1} parent=1 // pred_check_branch
      %16 = sbr.rel (0) target = $region9
    $region8: #{tpu_custom_call.1} parent=1 // pred_region
      _
    $region9: #{tpu_custom_call.1} parent=1 // pred_fallthru
      _
    // Predicated region
    $region10: #{tpu_custom_call.1} parent=1 // pred_check
      _
    $region11: #{tpu_custom_call.1} parent=1 // pred_check_branch
      %18 = sbr.rel (0) target = $region13
    $region12: #{tpu_custom_call.1} parent=1 // pred_region
      _
    $region13: #{tpu_custom_call.1} parent=1 // pred_fallthru
      _
    // Predicated region
    $region14: #{tpu_custom_call.1} parent=1 // pred_check
      _
    $region15: #{tpu_custom_call.1} parent=1 // pred_check_branch
      %20 = sbr.rel (0) target = $region17
    $region16: #{tpu_custom_call.1} parent=1 // pred_region
      _
    $region17: #{tpu_custom_call.1} parent=1 // pred_fallthru
      _
    // Predicated region
    $region18: #{tpu_custom_call.1} parent=1 // pred_check
      _
    $region19: #{tpu_custom_call.1} parent=1 // pred_check_branch
      %22 = sbr.rel (0) target = $region21
    $region20: #{tpu_custom_call.1} parent=1 // pred_region
      _
    $region21: #{tpu_custom_call.1} parent=1 // pred_fallthru
      _
    // Predicated region
    $region22: #{tpu_custom_call.1} parent=1 // pred_check
      _
    $region23: #{tpu_custom_call.1} parent=1 // pred_check_branch
      %24 = sbr.rel (0) target = $region25
    $region24: #{tpu_custom_call.1} parent=1 // pred_region
      _
    $region25: #{tpu_custom_call.1} parent=1 // pred_fallthru
      _
    // Predicated region
    $region26: #{tpu_custom_call.1} parent=1 // pred_check
      _
    $region27: #{tpu_custom_call.1} parent=1 // pred_check_branch
      %26 = sbr.rel (0) target = $region29
    $region28: #{tpu_custom_call.1} parent=1 // pred_region
      _
    $region29: #{tpu_custom_call.1} parent=1 // pred_fallthru
      _
    %v27 = vld [vmem:[%s0] sm:$0xff]
    %v28 = vld [vmem:[%s1] sm:$0xff]
    %v29 = vld [vmem:[%s1 + $0x8] sm:$0xff]
    %v30 = vld [vmem:[%s2] sm:$0xff]
    %v31 = vld [vmem:[%s2 + $0x8] sm:$0xff]
    %v32 = vld [vmem:[%s2 + $0x10] sm:$0xff]
    %v33 = vld [vmem:[%s2 + $0x18] sm:$0xff]
    %v34 = vld [vmem:[%s2 + $0x20] sm:$0xff]
    %v35 = vld [vmem:[%s2 + $0x28] sm:$0xff]
    %v36 = vld [vmem:[%s2 + $0x30] sm:$0xff]
    %v37 = vld [vmem:[%s2 + $0x38] sm:$0xff]
    %39 = vset.pattern.permute.xlu0 0
    %40 = vperm.xlu0 %39, %v30
    %v41 = vpop.permute.xlu0 %40
    %44 = vset.pattern.permute.xlu0 0
    %45 = vperm.xlu0 %44, %v31
    %v46 = vpop.permute.xlu0 %45
    %49 = vset.pattern.permute.xlu0 0
    %50 = vperm.xlu0 %49, %v32
    %v51 = vpop.permute.xlu0 %50
    %54 = vset.pattern.permute.xlu0 0
    %55 = vperm.xlu0 %54, %v33
    %v56 = vpop.permute.xlu0 %55
    %59 = vset.pattern.permute.xlu0 0
    %60 = vperm.xlu0 %59, %v34
    %v61 = vpop.permute.xlu0 %60
    %64 = vset.pattern.permute.xlu0 0
    %65 = vperm.xlu0 %64, %v35
    %v66 = vpop.permute.xlu0 %65
    %69 = vset.pattern.permute.xlu0 0
    %70 = vperm.xlu0 %69, %v36
    %v71 = vpop.permute.xlu0 %70
    %74 = vset.pattern.permute.xlu0 0
    %75 = vperm.xlu0 %74, %v37
    %v76 = vpop.permute.xlu0 %75
    %78 = vxpose.xlu0.b32.start [1/16] %v28, 128
    %79 = vxpose.xlu0.b32.cont [2/16] %v29, 128
    %80 = vxpose.xlu0.b32.cont [3/16] 0.0, 128
    %81 = vxpose.xlu0.b32.cont [4/16] 0.0, 128
    %82 = vxpose.xlu0.b32.cont [5/16] 0.0, 128
    %83 = vxpose.xlu0.b32.cont [6/16] 0.0, 128
    %84 = vxpose.xlu0.b32.cont [7/16] 0.0, 128
    %85 = vxpose.xlu0.b32.cont [8/16] 0.0, 128
    %86 = vxpose.xlu0.b32.cont [9/16] 0.0, 128
    %87 = vxpose.xlu0.b32.cont [10/16] 0.0, 128
    %88 = vxpose.xlu0.b32.cont [11/16] 0.0, 128
    %89 = vxpose.xlu0.b32.cont [12/16] 0.0, 128
    %90 = vxpose.xlu0.b32.cont [13/16] 0.0, 128
    %91 = vxpose.xlu0.b32.cont [14/16] 0.0, 128
    %92 = vxpose.xlu0.b32.cont [15/16] 0.0, 128
    %93 = vxpose.xlu0.b32.end [16/16] 0.0, 128
    %v94 = vpop.trf.xlu0
    %v95 = vpop.trf.xlu0
    %v96 = vpop.trf.xlu0
    %v97 = vpop.trf.xlu0
    %v98 = vpop.trf.xlu0
    %v99 = vpop.trf.xlu0
    %v100 = vpop.trf.xlu0
    %v101 = vpop.trf.xlu0
    %v102 = vpop.trf.xlu0
    %v103 = vpop.trf.xlu0
    %v104 = vpop.trf.xlu0
    %v105 = vpop.trf.xlu0
    %v106 = vpop.trf.xlu0
    %v107 = vpop.trf.xlu0
    %v108 = vpop.trf.xlu0
    %v109 = vpop.trf.xlu0
    %vm110 = vcmask 130048
    %v112 = vsel %vm110, %v94, 0
    %v115 = vsel %vm110, %v95, 0
    %v118 = vsel %vm110, %v96, 0
    %v121 = vsel %vm110, %v97, 0
    %v124 = vsel %vm110, %v98, 0
    %v127 = vsel %vm110, %v99, 0
    %v130 = vsel %vm110, %v100, 0
    %v133 = vsel %vm110, %v101, 0
    %v136 = vsel %vm110, %v27, 0
    %138 = vmatprep.subr.mxu0 0.0
    %139 = vmatpush1.xpose.msra.mxu0 %v136
    %140 = vmatprep.subr.mxu0 0.0
    %141 = vmatpush1.xpose.msra.mxu0 0.0
    %142 = vmatprep.subr.mxu0 0.0
    %143 = vmatpush1.xpose.msra.mxu0 0.0
    %144 = vmatprep.subr.mxu0 0.0
    %145 = vmatpush1.xpose.msra.mxu0 0.0
    %146 = vmatprep.subr.mxu0 0.0
    %147 = vmatpush1.xpose.msra.mxu0 0.0
    %148 = vmatprep.subr.mxu0 0.0
    %149 = vmatpush1.xpose.msra.mxu0 0.0
    %150 = vmatprep.subr.mxu0 0.0
    %151 = vmatpush1.xpose.msra.mxu0 0.0
    %152 = vmatprep.subr.mxu0 0.0
    %153 = vmatpush1.xpose.msra.mxu0 0.0
    %154 = vmatprep.subr.mxu0 0.0
    %155 = vmatpush1.xpose.msra.mxu0 0.0
    %156 = vmatprep.subr.mxu0 0.0
    %157 = vmatpush1.xpose.msra.mxu0 0.0
    %158 = vmatprep.subr.mxu0 0.0
    %159 = vmatpush1.xpose.msra.mxu0 0.0
    %160 = vmatprep.subr.mxu0 0.0
    %161 = vmatpush1.xpose.msra.mxu0 0.0
    %162 = vmatprep.subr.mxu0 0.0
    %163 = vmatpush1.xpose.msra.mxu0 0.0
    %164 = vmatprep.subr.mxu0 0.0
    %165 = vmatpush1.xpose.msra.mxu0 0.0
    %166 = vmatprep.subr.mxu0 0.0
    %167 = vmatpush1.xpose.msra.mxu0 0.0
    %168 = vmatprep.subr.mxu0 0.0
    %169 = vmatpush1.xpose.msra.mxu0 0.0
    %170 = vmatprep.subr.mxu0 0.0
    %171 = vmatpush1.xpose.msra.mxu0 0.0
    %172 = vmatprep.subr.mxu0 0.0
    %173 = vmatpush1.xpose.msra.mxu0 0.0
    %174 = vmatprep.subr.mxu0 0.0
    %175 = vmatpush1.xpose.msra.mxu0 0.0
    %176 = vmatprep.subr.mxu0 0.0
    %177 = vmatpush1.xpose.msra.mxu0 0.0
    %178 = vmatprep.subr.mxu0 0.0
    %179 = vmatpush1.xpose.msra.mxu0 0.0
    %180 = vmatprep.subr.mxu0 0.0
    %181 = vmatpush1.xpose.msra.mxu0 0.0
    %182 = vmatprep.subr.mxu0 0.0
    %183 = vmatpush1.xpose.msra.mxu0 0.0
    %184 = vmatprep.subr.mxu0 0.0
    %185 = vmatpush1.xpose.msra.mxu0 0.0
    %186 = vmatprep.subr.mxu0 0.0
    %187 = vmatpush1.xpose.msra.mxu0 0.0
    %188 = vmatprep.subr.mxu0 0.0
    %189 = vmatpush1.xpose.msra.mxu0 0.0
    %190 = vmatprep.subr.mxu0 0.0
    %191 = vmatpush1.xpose.msra.mxu0 0.0
    %192 = vmatprep.subr.mxu0 0.0
    %193 = vmatpush1.xpose.msra.mxu0 0.0
    %194 = vmatprep.subr.mxu0 0.0
    %195 = vmatpush1.xpose.msra.mxu0 0.0
    %196 = vmatprep.subr.mxu0 0.0
    %197 = vmatpush1.xpose.msra.mxu0 0.0
    %198 = vmatprep.subr.mxu0 0.0
    %199 = vmatpush1.xpose.msra.mxu0 0.0
    %200 = vmatprep.subr.mxu0 0.0
    %201 = vmatpush1.xpose.msra.mxu0 0.0
    %202 = vmatprep.mubr.f32.mxu0 0.0
    %203 = vmatmul.mubr.f32.gmra.mrb[0].mxu0 %v112
    %v204 = vpop.f32.mrb[0].mxu0
    %v205 = vadd.f32 %v41, %v204
    %v206 = vpop.f32.mrb[0].mxu0
    %207 = vmatprep.mubr.f32.mxu0 0.0
    %208 = vmatmul.mubr.f32.gmra.mrb[0].mxu0 %v115
    %v209 = vpop.f32.mrb[0].mxu0
    %v210 = vadd.f32 %v46, %v209
    %v211 = vpop.f32.mrb[0].mxu0
    %212 = vmatprep.mubr.f32.mxu0 0.0
    %213 = vmatmul.mubr.f32.gmra.mrb[0].mxu0 %v118
    %v214 = vpop.f32.mrb[0].mxu0
    %v215 = vadd.f32 %v51, %v214
    %v216 = vpop.f32.mrb[0].mxu0
    %217 = vmatprep.mubr.f32.mxu0 0.0
    %218 = vmatmul.mubr.f32.gmra.mrb[0].mxu0 %v121
    %v219 = vpop.f32.mrb[0].mxu0
    %v220 = vadd.f32 %v56, %v219
    %v221 = vpop.f32.mrb[0].mxu0
    %222 = vmatprep.mubr.f32.mxu0 0.0
    %223 = vmatmul.mubr.f32.gmra.mrb[0].mxu0 %v124
    %v224 = vpop.f32.mrb[0].mxu0
    %v225 = vadd.f32 %v61, %v224
    %v226 = vpop.f32.mrb[0].mxu0
    %227 = vmatprep.mubr.f32.mxu0 0.0
    %228 = vmatmul.mubr.f32.gmra.mrb[0].mxu0 %v127
    %v229 = vpop.f32.mrb[0].mxu0
    %v230 = vadd.f32 %v66, %v229
    %v231 = vpop.f32.mrb[0].mxu0
    %232 = vmatprep.mubr.f32.mxu0 0.0
    %233 = vmatmul.mubr.f32.gmra.mrb[0].mxu0 %v130
    %v234 = vpop.f32.mrb[0].mxu0
    %v235 = vadd.f32 %v71, %v234
    %v236 = vpop.f32.mrb[0].mxu0
    %237 = vmatprep.mubr.f32.mxu0 0.0
    %238 = vmatmul.mubr.f32.gmra.mrb[0].mxu0 %v133
    %v239 = vpop.f32.mrb[0].mxu0
    %v240 = vadd.f32 %v76, %v239
    %v241 = vpop.f32.mrb[0].mxu0
    %242 = vdwg.mxu0
    %v243 = vtanh.pop %v205
    %v244 = vtanh.pop %v210
    %v245 = vtanh.pop %v215
    %v246 = vtanh.pop %v220
    %v247 = vtanh.pop %v225
    %v248 = vtanh.pop %v230
    %v249 = vtanh.pop %v235
    %v250 = vtanh.pop %v240
    %v251 = vld [vmem:[%s3] sm:$0xff]
    %v252 = vld [vmem:[%s3 + $0x8] sm:$0xff]
    %v253 = vld [vmem:[%s3 + $0x10] sm:$0xff]
    %v254 = vld [vmem:[%s3 + $0x18] sm:$0xff]
    %v255 = vld [vmem:[%s3 + $0x20] sm:$0xff]
    %v256 = vld [vmem:[%s3 + $0x28] sm:$0xff]
    %v257 = vld [vmem:[%s3 + $0x30] sm:$0xff]
    %v258 = vld [vmem:[%s3 + $0x38] sm:$0xff]
    %v259 = vld [vmem:[%s4] sm:$0xff]
    %v260 = vld [vmem:[%s4 + $0x8] sm:$0xff]
    %v261 = vld [vmem:[%s4 + $0x10] sm:$0xff]
    %v262 = vld [vmem:[%s4 + $0x18] sm:$0xff]
    %264 = vset.pattern.permute.xlu0 0
    %265 = vperm.xlu0 %264, %v259
    %v266 = vpop.permute.xlu0 %265
    %269 = vset.pattern.permute.xlu0 0
    %270 = vperm.xlu0 %269, %v260
    %v271 = vpop.permute.xlu0 %270
    %274 = vset.pattern.permute.xlu0 0
    %275 = vperm.xlu0 %274, %v261
    %v276 = vpop.permute.xlu0 %275
    %279 = vset.pattern.permute.xlu0 0
    %280 = vperm.xlu0 %279, %v262
    %v281 = vpop.permute.xlu0 %280
    %283 = vxpose.xlu0.b32.start [1/16] %v251, 128
    %284 = vxpose.xlu0.b32.cont [2/16] %v252, 128
    %285 = vxpose.xlu0.b32.cont [3/16] %v253, 128
    %286 = vxpose.xlu0.b32.cont [4/16] %v254, 128
    %287 = vxpose.xlu0.b32.cont [5/16] %v255, 128
    %288 = vxpose.xlu0.b32.cont [6/16] %v256, 128
    %289 = vxpose.xlu0.b32.cont [7/16] %v257, 128
    %290 = vxpose.xlu0.b32.cont [8/16] %v258, 128
    %291 = vxpose.xlu0.b32.cont [9/16] 0.0, 128
    %292 = vxpose.xlu0.b32.cont [10/16] 0.0, 128
    %293 = vxpose.xlu0.b32.cont [11/16] 0.0, 128
    %294 = vxpose.xlu0.b32.cont [12/16] 0.0, 128
    %295 = vxpose.xlu0.b32.cont [13/16] 0.0, 128
    %296 = vxpose.xlu0.b32.cont [14/16] 0.0, 128
    %297 = vxpose.xlu0.b32.cont [15/16] 0.0, 128
    %298 = vxpose.xlu0.b32.end [16/16] 0.0, 128
    %v299 = vpop.trf.xlu0
    %v300 = vpop.trf.xlu0
    %v301 = vpop.trf.xlu0
    %v302 = vpop.trf.xlu0
    %v303 = vpop.trf.xlu0
    %v304 = vpop.trf.xlu0
    %v305 = vpop.trf.xlu0
    %v306 = vpop.trf.xlu0
    %v307 = vpop.trf.xlu0
    %v308 = vpop.trf.xlu0
    %v309 = vpop.trf.xlu0
    %v310 = vpop.trf.xlu0
    %v311 = vpop.trf.xlu0
    %v312 = vpop.trf.xlu0
    %v313 = vpop.trf.xlu0
    %v314 = vpop.trf.xlu0
    %vm315 = vcmask 523264
    %v317 = vsel %vm315, %v299, 0
    %v320 = vsel %vm315, %v300, 0
    %v323 = vsel %vm315, %v301, 0
    %v326 = vsel %vm315, %v302, 0
    %328 = vmatprep.subr.mxu0 0.0
    %329 = vmatpush1.msra.mxu0 %v243
    %330 = vmatprep.subr.mxu0 0.0
    %331 = vmatpush1.msra.mxu0 %v244
    %332 = vmatprep.subr.mxu0 0.0
    %333 = vmatpush1.msra.mxu0 %v245
    %334 = vmatprep.subr.mxu0 0.0
    %335 = vmatpush1.msra.mxu0 %v246
    %336 = vmatprep.subr.mxu0 0.0
    %337 = vmatpush1.msra.mxu0 %v247
    %338 = vmatprep.subr.mxu0 0.0
    %339 = vmatpush1.msra.mxu0 %v248
    %340 = vmatprep.subr.mxu0 0.0
    %341 = vmatpush1.msra.mxu0 %v249
    %342 = vmatprep.subr.mxu0 0.0
    %343 = vmatpush1.msra.mxu0 %v250
    %344 = vmatprep.subr.mxu0 0.0
    %345 = vmatpush1.msra.mxu0 0.0
    %346 = vmatprep.subr.mxu0 0.0
    %347 = vmatpush1.msra.mxu0 0.0
    %348 = vmatprep.subr.mxu0 0.0
    %349 = vmatpush1.msra.mxu0 0.0
    %350 = vmatprep.subr.mxu0 0.0
    %351 = vmatpush1.msra.mxu0 0.0
    %352 = vmatprep.subr.mxu0 0.0
    %353 = vmatpush1.msra.mxu0 0.0
    %354 = vmatprep.subr.mxu0 0.0
    %355 = vmatpush1.msra.mxu0 0.0
    %356 = vmatprep.subr.mxu0 0.0
    %357 = vmatpush1.msra.mxu0 0.0
    %358 = vmatprep.subr.mxu0 0.0
    %359 = vmatpush1.msra.mxu0 0.0
    %360 = vmatprep.subr.mxu0 0.0
    %361 = vmatpush1.msra.mxu0 0.0
    %362 = vmatprep.subr.mxu0 0.0
    %363 = vmatpush1.msra.mxu0 0.0
    %364 = vmatprep.subr.mxu0 0.0
    %365 = vmatpush1.msra.mxu0 0.0
    %366 = vmatprep.subr.mxu0 0.0
    %367 = vmatpush1.msra.mxu0 0.0
    %368 = vmatprep.subr.mxu0 0.0
    %369 = vmatpush1.msra.mxu0 0.0
    %370 = vmatprep.subr.mxu0 0.0
    %371 = vmatpush1.msra.mxu0 0.0
    %372 = vmatprep.subr.mxu0 0.0
    %373 = vmatpush1.msra.mxu0 0.0
    %374 = vmatprep.subr.mxu0 0.0
    %375 = vmatpush1.msra.mxu0 0.0
    %376 = vmatprep.subr.mxu0 0.0
    %377 = vmatpush1.msra.mxu0 0.0
    %378 = vmatprep.subr.mxu0 0.0
    %379 = vmatpush1.msra.mxu0 0.0
    %380 = vmatprep.subr.mxu0 0.0
    %381 = vmatpush1.msra.mxu0 0.0
    %382 = vmatprep.subr.mxu0 0.0
    %383 = vmatpush1.msra.mxu0 0.0
    %384 = vmatprep.subr.mxu0 0.0
    %385 = vmatpush1.msra.mxu0 0.0
    %386 = vmatprep.subr.mxu0 0.0
    %387 = vmatpush1.msra.mxu0 0.0
    %388 = vmatprep.subr.mxu0 0.0
    %389 = vmatpush1.msra.mxu0 0.0
    %390 = vmatprep.subr.mxu0 0.0
    %391 = vmatpush1.msra.mxu0 0.0
    %392 = vmatprep.mubr.f32.mxu0 0.0
    %393 = vmatmul.mubr.f32.gmra.mrb[0].mxu0 %v317
    %v394 = vpop.f32.mrb[0].mxu0
    %v395 = vadd.f32 %v266, %v394
    %v396 = vpop.f32.mrb[0].mxu0
    %397 = vmatprep.mubr.f32.mxu0 0.0
    %398 = vmatmul.mubr.f32.gmra.mrb[0].mxu0 %v320
    %v399 = vpop.f32.mrb[0].mxu0
    %v400 = vadd.f32 %v271, %v399
    %v401 = vpop.f32.mrb[0].mxu0
    %402 = vmatprep.mubr.f32.mxu0 0.0
    %403 = vmatmul.mubr.f32.gmra.mrb[0].mxu0 %v323
    %v404 = vpop.f32.mrb[0].mxu0
    %v405 = vadd.f32 %v276, %v404
    %v406 = vpop.f32.mrb[0].mxu0
    %407 = vmatprep.mubr.f32.mxu0 0.0
    %408 = vmatmul.mubr.f32.gmra.mrb[0].mxu0 %v326
    %v409 = vpop.f32.mrb[0].mxu0
    %v410 = vadd.f32 %v281, %v409
    %v411 = vpop.f32.mrb[0].mxu0
    %412 = vdwg.mxu0
    %v413 = vtanh.pop %v395
    %v414 = vtanh.pop %v400
    %v415 = vtanh.pop %v405
    %v416 = vtanh.pop %v410
    %v417 = vld [vmem:[%s5] sm:$0xff]
    %v418 = vld [vmem:[%s5 + $0x8] sm:$0xff]
    %v419 = vld [vmem:[%s5 + $0x10] sm:$0xff]
    %v420 = vld [vmem:[%s5 + $0x18] sm:$0xff]
    %v421 = vld [vmem:[%s6] sm:$0xff]
    %423 = vset.pattern.permute.xlu0 0
    %424 = vperm.xlu0 %423, %v421
    %v425 = vpop.permute.xlu0 %424
    %427 = vxpose.xlu0.b32.start [1/16] %v417, 128
    %428 = vxpose.xlu0.b32.cont [2/16] %v418, 128
    %429 = vxpose.xlu0.b32.cont [3/16] %v419, 128
    %430 = vxpose.xlu0.b32.cont [4/16] %v420, 128
    %431 = vxpose.xlu0.b32.cont [5/16] 0.0, 128
    %432 = vxpose.xlu0.b32.cont [6/16] 0.0, 128
    %433 = vxpose.xlu0.b32.cont [7/16] 0.0, 128
    %434 = vxpose.xlu0.b32.cont [8/16] 0.0, 128
    %435 = vxpose.xlu0.b32.cont [9/16] 0.0, 128
    %436 = vxpose.xlu0.b32.cont [10/16] 0.0, 128
    %437 = vxpose.xlu0.b32.cont [11/16] 0.0, 128
    %438 = vxpose.xlu0.b32.cont [12/16] 0.0, 128
    %439 = vxpose.xlu0.b32.cont [13/16] 0.0, 128
    %440 = vxpose.xlu0.b32.cont [14/16] 0.0, 128
    %441 = vxpose.xlu0.b32.cont [15/16] 0.0, 128
    %442 = vxpose.xlu0.b32.end [16/16] 0.0, 128
    %v443 = vpop.trf.xlu0
    %v444 = vpop.trf.xlu0
    %v445 = vpop.trf.xlu0
    %v446 = vpop.trf.xlu0
    %v447 = vpop.trf.xlu0
    %v448 = vpop.trf.xlu0
    %v449 = vpop.trf.xlu0
    %v450 = vpop.trf.xlu0
    %v451 = vpop.trf.xlu0
    %v452 = vpop.trf.xlu0
    %v453 = vpop.trf.xlu0
    %v454 = vpop.trf.xlu0
    %v455 = vpop.trf.xlu0
    %v456 = vpop.trf.xlu0
    %v457 = vpop.trf.xlu0
    %v458 = vpop.trf.xlu0
    %vm459 = vcmask 261120
    %v461 = vsel %vm459, %v443, 0
    %463 = vmatprep.subr.mxu0 0.0
    %464 = vmatpush1.msra.mxu0 %v413
    %465 = vmatprep.subr.mxu0 0.0
    %466 = vmatpush1.msra.mxu0 %v414
    %467 = vmatprep.subr.mxu0 0.0
    %468 = vmatpush1.msra.mxu0 %v415
    %469 = vmatprep.subr.mxu0 0.0
    %470 = vmatpush1.msra.mxu0 %v416
    %471 = vmatprep.subr.mxu0 0.0
    %472 = vmatpush1.msra.mxu0 0.0
    %473 = vmatprep.subr.mxu0 0.0
    %474 = vmatpush1.msra.mxu0 0.0
    %475 = vmatprep.subr.mxu0 0.0
    %476 = vmatpush1.msra.mxu0 0.0
    %477 = vmatprep.subr.mxu0 0.0
    %478 = vmatpush1.msra.mxu0 0.0
    %479 = vmatprep.subr.mxu0 0.0
    %480 = vmatpush1.msra.mxu0 0.0
    %481 = vmatprep.subr.mxu0 0.0
    %482 = vmatpush1.msra.mxu0 0.0
    %483 = vmatprep.subr.mxu0 0.0
    %484 = vmatpush1.msra.mxu0 0.0
    %485 = vmatprep.subr.mxu0 0.0
    %486 = vmatpush1.msra.mxu0 0.0
    %487 = vmatprep.subr.mxu0 0.0
    %488 = vmatpush1.msra.mxu0 0.0
    %489 = vmatprep.subr.mxu0 0.0
    %490 = vmatpush1.msra.mxu0 0.0
    %491 = vmatprep.subr.mxu0 0.0
    %492 = vmatpush1.msra.mxu0 0.0
    %493 = vmatprep.subr.mxu0 0.0
    %494 = vmatpush1.msra.mxu0 0.0
    %495 = vmatprep.subr.mxu0 0.0
    %496 = vmatpush1.msra.mxu0 0.0
    %497 = vmatprep.subr.mxu0 0.0
    %498 = vmatpush1.msra.mxu0 0.0
    %499 = vmatprep.subr.mxu0 0.0
    %500 = vmatpush1.msra.mxu0 0.0
    %501 = vmatprep.subr.mxu0 0.0
    %502 = vmatpush1.msra.mxu0 0.0
    %503 = vmatprep.subr.mxu0 0.0
    %504 = vmatpush1.msra.mxu0 0.0
    %505 = vmatprep.subr.mxu0 0.0
    %506 = vmatpush1.msra.mxu0 0.0
    %507 = vmatprep.subr.mxu0 0.0
    %508 = vmatpush1.msra.mxu0 0.0
    %509 = vmatprep.subr.mxu0 0.0
    %510 = vmatpush1.msra.mxu0 0.0
    %511 = vmatprep.subr.mxu0 0.0
    %512 = vmatpush1.msra.mxu0 0.0
    %513 = vmatprep.subr.mxu0 0.0
    %514 = vmatpush1.msra.mxu0 0.0
    %515 = vmatprep.subr.mxu0 0.0
    %516 = vmatpush1.msra.mxu0 0.0
    %517 = vmatprep.subr.mxu0 0.0
    %518 = vmatpush1.msra.mxu0 0.0
    %519 = vmatprep.subr.mxu0 0.0
    %520 = vmatpush1.msra.mxu0 0.0
    %521 = vmatprep.subr.mxu0 0.0
    %522 = vmatpush1.msra.mxu0 0.0
    %523 = vmatprep.subr.mxu0 0.0
    %524 = vmatpush1.msra.mxu0 0.0
    %525 = vmatprep.subr.mxu0 0.0
    %526 = vmatpush1.msra.mxu0 0.0
    %527 = vmatprep.mubr.f32.mxu0 0.0
    %528 = vmatmul.mubr.f32.gmra.mrb[0].mxu0 %v461
    %v529 = vpop.f32.mrb[0].mxu0
    %v530 = vadd.f32 %v425, %v529
    %v531 = vpop.f32.mrb[0].mxu0
    %532 = vdwg.mxu0
    %vm533 = vcmask 64512
    %v534 = vsel %vm533, %v530, -inf
    %v535 = vrot.slane %v534, 4
    %v536 = vmax.f32 %v534, %v535
    %v537 = vrot.slane %v536, 2
    %v538 = vmax.f32 %v536, %v537
    %v539 = vrot.slane %v538, 1
    %v540 = vmax.f32 %v538, %v539
    %v541 = vsub.f32 %v530, %v540
    %v542 = vmul.f32 %v541, 1.442695
    %v543 = vpow.pop %v542
    %v544 = vsel %vm533, %v543, 0.0
    %v545 = vrot.slane %v544, 4
    %v546 = vadd.f32 %v544, %v545
    %v547 = vrot.slane %v546, 2
    %v548 = vadd.f32 %v546, %v547
    %v549 = vrot.slane %v548, 1
    %v550 = vadd.f32 %v548, %v549
    %v551 = vrcp.pop %v550
    %v552 = vmul.f32 %v543, %v551
    %553 = vst.msk [vmem:[#allocation2] sm:$0xff] %vm533, %v552
    // Predicated region
    $region30: #{tpu_custom_call.1} parent=1 // pred_check
      _
    $region31: #{tpu_custom_call.1} parent=1 // pred_check_branch
      %555 = sbr.rel (0) target = $region33
    $region32: #{tpu_custom_call.1} parent=1 // pred_region
      %s557 = ssub.s32 128, 128
      %558 = vsyncadd [#allocation3], %s557
      %s560 = sshll.u32 [#allocation2], 4
      %s561 = int_to_ptr.vmem [resolvable:$true] %s560
      %563 = dma.vmem_to_hbm [thread:$0]  %s561, 128, %s7, [#allocation3]
    $region33: #{tpu_custom_call.1} parent=1 // pred_fallthru
      _
    // Predicated region
    $region34: #{tpu_custom_call.1} parent=1 // pred_check
      _
    $region35: #{tpu_custom_call.1} parent=1 // pred_check_branch
      %565 = sbr.rel (0) target = $region37
    $region36: #{tpu_custom_call.1} parent=1 // pred_region
      %566 = dma.done [#allocation3], 128
    $region37: #{tpu_custom_call.1} parent=1 // pred_fallthru
      _
    %567 = vsyncpa [#allocation3], 1

</llo_original>
